<compile_context>
chip_gen: v7x
topology: tpu7x:2x2x1
jax: 0.10.0
libtpu: 0.0.40
codegen_flags: <defaults>
</compile_context>

<pallas_src>
import functools

import jax
import jax.numpy as jnp
from jax.experimental import pallas as pl
from jax.experimental.pallas import tpu as pltpu

LANE = 128
_NEG_BIG = -1e30  # padded-logit bias -> exp underflows to exactly 0


def _round_up(x, m):
    return ((x + m - 1) // m) * m


def actor_kernel(x_ref, w1_ref, b1_ref, w2_ref, b2_ref, w3_ref, b3_ref, out_ref):
    # fc1 + ReLU  (bf16 operands, f32 accumulate on the MXU)
    h1 = jnp.dot(x_ref[...].astype(jnp.bfloat16), w1_ref[...],
                 preferred_element_type=jnp.float32)
    h1 = jnp.maximum(h1 + b1_ref[...], 0.0)
    # fc2 + ReLU
    h2 = jnp.dot(h1.astype(jnp.bfloat16), w2_ref[...],
                 preferred_element_type=jnp.float32)
    h2 = jnp.maximum(h2 + b2_ref[...], 0.0)
    # fc3 (logits); padded head columns have zero weights and -1e30 bias,
    # so they vanish in the softmax (exp -> 0) without extra masking.
    logits = jnp.dot(h2.astype(jnp.bfloat16), w3_ref[...],
                     preferred_element_type=jnp.float32)
    logits = logits + b3_ref[...]
    # numerically stable softmax over the lane-dense last axis
    m = jnp.max(logits, axis=-1, keepdims=True)
    e = jnp.exp(logits - m)
    s = jnp.sum(e, axis=-1, keepdims=True)
    out_ref[...] = e * pl.reciprocal(s, approx=True)


def prepare_params(params):
    """One-time conversion of f32 (in, out)-layout params to kernel layout.

    Weights -> bf16; head weight/bias padded on the output axis to a multiple
    of 128 lanes (zero weights, -1e30 bias on padded lanes).
    """
    w1, b1, w2, b2, w3, b3 = params
    n_actions = w3.shape[1]
    n_pad = _round_up(n_actions, LANE)
    if n_pad != n_actions:
        w3 = jnp.pad(w3, ((0, 0), (0, n_pad - n_actions)))
        b3 = jnp.pad(b3, ((0, 0), (0, n_pad - n_actions)),
                     constant_values=_NEG_BIG)
    return (w1.astype(jnp.bfloat16), b1.astype(jnp.float32),
            w2.astype(jnp.bfloat16), b2.astype(jnp.float32),
            w3.astype(jnp.bfloat16), b3.astype(jnp.float32)), n_actions


@functools.partial(jax.jit, static_argnames=("n_actions",))
def actor_forward(x, kernel_params, n_actions):
    """Run the ActorNetwork forward pass; returns (B, n_actions) probs."""
    w1, b1, w2, b2, w3, b3 = kernel_params
    B, state_dims = x.shape
    n_pad = w3.shape[1]
    fc1 = w1.shape[1]
    fc2 = w2.shape[1]

    # Grid over batch: block_B rows per step, weights resident across steps.
    block_B = min(512, _round_up(B, 8))
    Bp = _round_up(B, block_B)
    if Bp != B:
        x = jnp.pad(x, ((0, Bp - B), (0, 0)))
    grid = (Bp // block_B,)

    full = lambda a: pl.BlockSpec(a.shape, lambda i: tuple(0 for _ in a.shape))

    flops = 2 * Bp * (state_dims * fc1 + fc1 * fc2 + fc2 * n_pad)
    bytes_accessed = (x.size * 4 + Bp * n_pad * 4
                      + w1.size * 2 + w2.size * 2 + w3.size * 2
                      + (b1.size + b2.size + b3.size) * 4)
    cost = pl.CostEstimate(flops=flops,
                           transcendentals=Bp * n_pad + Bp,
                           bytes_accessed=bytes_accessed)

    probs_pad = pl.pallas_call(
        actor_kernel,
        out_shape=jax.ShapeDtypeStruct((Bp, n_pad), jnp.float32),
        grid_spec=pltpu.PrefetchScalarGridSpec(
            num_scalar_prefetch=0,
            grid=grid,
            in_specs=[pl.BlockSpec((block_B, state_dims), lambda i: (i, 0)),
                      full(w1), full(b1), full(w2), full(b2),
                      full(w3), full(b3)],
            out_specs=pl.BlockSpec((block_B, n_pad), lambda i: (i, 0)),
        ),
        compiler_params=pltpu.CompilerParams(
            dimension_semantics=("parallel",)),
        cost_estimate=cost,
    )(x, w1, b1, w2, b2, w3, b3)

    return probs_pad[:B, :n_actions]


def reference_forward(x, params):
    """Pure-JAX f32 reference of the PyTorch forward (probs only)."""
    w1, b1, w2, b2, w3, b3 = params
    h1 = jnp.maximum(x @ w1 + b1, 0.0)
    h2 = jnp.maximum(h1 @ w2 + b2, 0.0)
    return jax.nn.softmax(h2 @ w3 + b3, axis=-1)


def init_params(key, state_dims, n_actions, fc1_dims=256, fc2_dims=256):
    """Deterministic init mimicking nn.Linear default (U[-1/sqrt(fan_in), +])."""
    ks = jax.random.split(key, 6)

    def lin(kw, kb, fan_in, fan_out):
        bound = 1.0 / jnp.sqrt(fan_in)
        w = jax.random.uniform(kw, (fan_in, fan_out), jnp.float32, -bound, bound)
        b = jax.random.uniform(kb, (1, fan_out), jnp.float32, -bound, bound)
        return w, b

    w1, b1 = lin(ks[0], ks[1], state_dims, fc1_dims)
    w2, b2 = lin(ks[2], ks[3], fc1_dims, fc2_dims)
    w3, b3 = lin(ks[4], ks[5], fc2_dims, n_actions)
    return (w1, b1, w2, b2, w3, b3)


if __name__ == "__main__":
    # CartPole-v0: state_dims=4, n_actions=2
    state_dims, n_actions = 4, 2
    batch = 8

    key = jax.random.PRNGKey(0)
    k_params, k_x = jax.random.split(key)
    params = init_params(k_params, state_dims, n_actions)
    kernel_params, n_act = prepare_params(params)
    x = jax.random.normal(k_x, (batch, state_dims), dtype=jnp.float32)

    probs = actor_forward(x, kernel_params, n_act)
    probs = jax.block_until_ready(probs)

    # sanity: probabilities form a valid categorical distribution per row
    # (tolerance loosened for bf16 matmuls + approx EUP reciprocal)
    assert probs.shape == (batch, n_actions)
    assert bool(jnp.all(probs >= 0.0))
    assert bool(jnp.allclose(jnp.sum(probs, axis=-1), 1.0, atol=1e-2))

    # correctness vs pure-JAX f32 reference (loose tolerance: bf16 MXU + approx recip)
    ref = reference_forward(x, params)
    assert bool(jnp.allclose(probs, ref, atol=5e-2))

    # TODO(synk): Categorical sampling / log_prob and the Adam optimizer are
    # distribution/optimizer glue, not kernel compute; they stay outside Pallas.
    print("KERNEL_OK")
</pallas_src>

<mosaic_0001>
module attributes {stable_mosaic.version = 11 : i64} {
  func.func @actor_kernel(%arg0: i32, %arg1: memref<8x4xf32, #tpu.memory_space<vmem>>, %arg2: memref<4x256xbf16, #tpu.memory_space<vmem>>, %arg3: memref<1x256xf32, #tpu.memory_space<vmem>>, %arg4: memref<256x256xbf16, #tpu.memory_space<vmem>>, %arg5: memref<1x256xf32, #tpu.memory_space<vmem>>, %arg6: memref<256x128xbf16, #tpu.memory_space<vmem>>, %arg7: memref<1x128xf32, #tpu.memory_space<vmem>>, %arg8: memref<8x128xf32, #tpu.memory_space<vmem>>) attributes {dimension_semantics = [#tpu.dimension_semantics<parallel>], iteration_bounds = array<i64: 1>, scalar_prefetch = 0 : i64, scratch_operands = 0 : i64, tpu.core_type = #tpu.core_type<tc>, window_params = [{transform_indices = @transform_0, window_bounds = array<i64: 8, 4>}, {pipeline_mode = #tpu.pipeline_mode<synchronous>, transform_indices = @transform_1, window_bounds = array<i64: 4, 256>}, {pipeline_mode = #tpu.pipeline_mode<synchronous>, transform_indices = @transform_2, window_bounds = array<i64: 1, 256>}, {pipeline_mode = #tpu.pipeline_mode<synchronous>, transform_indices = @transform_3, window_bounds = array<i64: 256, 256>}, {pipeline_mode = #tpu.pipeline_mode<synchronous>, transform_indices = @transform_4, window_bounds = array<i64: 1, 256>}, {pipeline_mode = #tpu.pipeline_mode<synchronous>, transform_indices = @transform_5, window_bounds = array<i64: 256, 128>}, {pipeline_mode = #tpu.pipeline_mode<synchronous>, transform_indices = @transform_6, window_bounds = array<i64: 1, 128>}, {transform_indices = @transform_7, window_bounds = array<i64: 8, 128>}]} {
    %c0 = arith.constant 0 : index
    %c0_0 = arith.constant 0 : index
    %0 = vector.load %arg1[%c0, %c0_0] : memref<8x4xf32, #tpu.memory_space<vmem>>, vector<8x4xf32>
    %1 = arith.truncf %0 : vector<8x4xf32> to vector<8x4xbf16>
    %c0_1 = arith.constant 0 : index
    %c0_2 = arith.constant 0 : index
    %2 = vector.load %arg2[%c0_1, %c0_2] : memref<4x256xbf16, #tpu.memory_space<vmem>>, vector<4x256xbf16>
    %cst = arith.constant dense<0.000000e+00> : vector<8x256xf32>
    %3 = tpu.matmul %1, %2, %cst {dimension_numbers = #tpu.dot_dimension_numbers<[1], [0], [0], [1], [0, 0, 1, 1], [], []>} : vector<8x4xbf16>, vector<4x256xbf16>, vector<8x256xf32> -> vector<8x256xf32>
    %c0_3 = arith.constant 0 : index
    %c0_4 = arith.constant 0 : index
    %4 = vector.load %arg3[%c0_3, %c0_4] : memref<1x256xf32, #tpu.memory_space<vmem>>, vector<1x256xf32>
    %5 = vector.broadcast %4 : vector<1x256xf32> to vector<8x256xf32>
    %6 = arith.addf %3, %5 : vector<8x256xf32>
    %cst_5 = arith.constant 0.000000e+00 : f32
    %7 = vector.broadcast %cst_5 : f32 to vector<8x256xf32>
    %8 = arith.maximumf %6, %7 : vector<8x256xf32>
    %9 = arith.truncf %8 : vector<8x256xf32> to vector<8x256xbf16>
    %c0_6 = arith.constant 0 : index
    %c0_7 = arith.constant 0 : index
    %10 = vector.load %arg4[%c0_6, %c0_7] : memref<256x256xbf16, #tpu.memory_space<vmem>>, vector<256x256xbf16>
    %cst_8 = arith.constant dense<0.000000e+00> : vector<8x256xf32>
    %11 = tpu.matmul %9, %10, %cst_8 {dimension_numbers = #tpu.dot_dimension_numbers<[1], [0], [0], [1], [0, 0, 1, 1], [], []>} : vector<8x256xbf16>, vector<256x256xbf16>, vector<8x256xf32> -> vector<8x256xf32>
    %c0_9 = arith.constant 0 : index
    %c0_10 = arith.constant 0 : index
    %12 = vector.load %arg5[%c0_9, %c0_10] : memref<1x256xf32, #tpu.memory_space<vmem>>, vector<1x256xf32>
    %13 = vector.broadcast %12 : vector<1x256xf32> to vector<8x256xf32>
    %14 = arith.addf %11, %13 : vector<8x256xf32>
    %cst_11 = arith.constant 0.000000e+00 : f32
    %15 = vector.broadcast %cst_11 : f32 to vector<8x256xf32>
    %16 = arith.maximumf %14, %15 : vector<8x256xf32>
    %17 = arith.truncf %16 : vector<8x256xf32> to vector<8x256xbf16>
    %c0_12 = arith.constant 0 : index
    %c0_13 = arith.constant 0 : index
    %18 = vector.load %arg6[%c0_12, %c0_13] : memref<256x128xbf16, #tpu.memory_space<vmem>>, vector<256x128xbf16>
    %cst_14 = arith.constant dense<0.000000e+00> : vector<8x128xf32>
    %19 = tpu.matmul %17, %18, %cst_14 {dimension_numbers = #tpu.dot_dimension_numbers<[1], [0], [0], [1], [0, 0, 1, 1], [], []>} : vector<8x256xbf16>, vector<256x128xbf16>, vector<8x128xf32> -> vector<8x128xf32>
    %c0_15 = arith.constant 0 : index
    %c0_16 = arith.constant 0 : index
    %20 = vector.load %arg7[%c0_15, %c0_16] : memref<1x128xf32, #tpu.memory_space<vmem>>, vector<1x128xf32>
    %21 = vector.broadcast %20 : vector<1x128xf32> to vector<8x128xf32>
    %22 = arith.addf %19, %21 : vector<8x128xf32>
    %cst_17 = arith.constant dense<0xFF800000> : vector<8xf32>
    %23 = vector.multi_reduction <maximumf>, %22, %cst_17 [1] : vector<8x128xf32> to vector<8xf32>
    %24 = vector.shape_cast %23 : vector<8xf32> to vector<8x1xf32>
    %25 = vector.broadcast %24 : vector<8x1xf32> to vector<8x128xf32>
    %26 = arith.subf %22, %25 : vector<8x128xf32>
    %27 = math.exp %26 : vector<8x128xf32>
    %cst_18 = arith.constant dense<0.000000e+00> : vector<8xf32>
    %28 = vector.multi_reduction <add>, %27, %cst_18 [1] : vector<8x128xf32> to vector<8xf32>
    %29 = vector.shape_cast %28 : vector<8xf32> to vector<8x1xf32>
    %30 = tpu.reciprocal %29 {approx = true} : vector<8x1xf32> -> vector<8x1xf32>
    %31 = vector.broadcast %30 : vector<8x1xf32> to vector<8x128xf32>
    %32 = arith.mulf %27, %31 : vector<8x128xf32>
    %c0_19 = arith.constant 0 : index
    %c0_20 = arith.constant 0 : index
    %33 = vector.load %arg8[%c0_19, %c0_20] : memref<8x128xf32, #tpu.memory_space<vmem>>, vector<8x128xf32>
    tpu.vector_store %arg8[%c0_19, %c0_20], %32 {strides = array<i32>} : memref<8x128xf32, #tpu.memory_space<vmem>>, vector<8x128xf32>,
    return
  }
  func.func @transform_0(%arg0: i32) -> (i32, i32) {
    %c0_i32 = arith.constant 0 : i32
    %c0_i32_0 = arith.constant 0 : i32
    return %arg0, %c0_i32 : i32, i32
  }
  func.func @transform_1(%arg0: i32) -> (i32, i32) {
    %c0_i32 = arith.constant 0 : i32
    %c0_i32_0 = arith.constant 0 : i32
    %c0_i32_1 = arith.constant 0 : i32
    return %c0_i32, %c0_i32_0 : i32, i32
  }
  func.func @transform_2(%arg0: i32) -> (i32, i32) {
    %c0_i32 = arith.constant 0 : i32
    %c0_i32_0 = arith.constant 0 : i32
    %c0_i32_1 = arith.constant 0 : i32
    return %c0_i32, %c0_i32_0 : i32, i32
  }
  func.func @transform_3(%arg0: i32) -> (i32, i32) {
    %c0_i32 = arith.constant 0 : i32
    %c0_i32_0 = arith.constant 0 : i32
    %c0_i32_1 = arith.constant 0 : i32
    return %c0_i32, %c0_i32_0 : i32, i32
  }
  func.func @transform_4(%arg0: i32) -> (i32, i32) {
    %c0_i32 = arith.constant 0 : i32
    %c0_i32_0 = arith.constant 0 : i32
    %c0_i32_1 = arith.constant 0 : i32
    return %c0_i32, %c0_i32_0 : i32, i32
  }
  func.func @transform_5(%arg0: i32) -> (i32, i32) {
    %c0_i32 = arith.constant 0 : i32
    %c0_i32_0 = arith.constant 0 : i32
    %c0_i32_1 = arith.constant 0 : i32
    return %c0_i32, %c0_i32_0 : i32, i32
  }
  func.func @transform_6(%arg0: i32) -> (i32, i32) {
    %c0_i32 = arith.constant 0 : i32
    %c0_i32_0 = arith.constant 0 : i32
    %c0_i32_1 = arith.constant 0 : i32
    return %c0_i32, %c0_i32_0 : i32, i32
  }
  func.func @transform_7(%arg0: i32) -> (i32, i32) {
    %c0_i32 = arith.constant 0 : i32
    %c0_i32_0 = arith.constant 0 : i32
    return %arg0, %c0_i32 : i32, i32
  }
}

</mosaic_0001>

<llo_original>
// kernel: actor_forward.1
$region0: #{actor_forward.1}
  #allocation0 [shape = 'u32[]', space=smem, size = 0x4, offset = 0x4, fixed_abs, tag = 'smem constant byte address 0x4 - core index']
  #allocation1 [shape = 'u32[144,128]{1,0:T(1,128)}', space=vmem, size = 0x12000, scoped, tag = 'internal scratch']
  %s0 = inlined_call_operand.vmem [shape: f32[8,4], index: 0, kind: input, shape index: {}]
  %s1 = inlined_call_operand.vmem [shape: bf16[4,256], index: 1, kind: input, shape index: {}]
  %s2 = inlined_call_operand.vmem [shape: f32[1,256], index: 2, kind: input, shape index: {}]
  %s3 = inlined_call_operand.hbm [shape: bf16[256,256], index: 3, kind: input, shape index: {}]
  %s4 = inlined_call_operand.vmem [shape: f32[1,256], index: 4, kind: input, shape index: {}]
  %s5 = inlined_call_operand.hbm [shape: bf16[256,128], index: 5, kind: input, shape index: {}]
  %s6 = inlined_call_operand.vmem [shape: f32[1,128], index: 6, kind: input, shape index: {}]
  %s7 = inlined_call_operand.vmem [shape: f32[8,128], index: 7, kind: output, shape index: {}]
  %s8 = sld [smem:[#allocation0]]
  $region46: #{actor_forward.1} parent=0
    _
  %s10 = ssub.s32 1, %s8
  %s11 = scalar_select 0, %s10, %s8
  $region1: #{actor_forward.1} parent=0
    #allocation2 [shape = 'u8[131072]{0}', space=vmem, size = 0x20000, scoped, tag = 'input window, operand 3, single buffered']
    #allocation3 [shape = 's32[1]{0}', space=sflag, size = 0x4, scoped, tag = 'scoped memory for actor_forward.1']
    #allocation4 [shape = 'u8[65536]{0}', space=vmem, size = 0x10000, scoped, tag = 'input window, operand 5, single buffered']
    #allocation5 [shape = 's32[1]{0}', space=sflag, size = 0x4, scoped, tag = 'scoped memory for actor_forward.1']
    %12 = vsyncpa [#allocation3], 0
    %13 = vsyncpa [#allocation5], 0
    // Predicated region
    $region2: #{actor_forward.1} parent=1 // pred_check
      _
    $region3: #{actor_forward.1} parent=1 // pred_check_branch
      %15 = sbr.rel (0) target = $region5
    $region4: #{actor_forward.1} parent=1 // pred_region
      _
    $region5: #{actor_forward.1} parent=1 // pred_fallthru
      _
    // Predicated region
    $region6: #{actor_forward.1} parent=1 // pred_check
      _
    $region7: #{actor_forward.1} parent=1 // pred_check_branch
      %17 = sbr.rel (0) target = $region9
    $region8: #{actor_forward.1} parent=1 // pred_region
      _
    $region9: #{actor_forward.1} parent=1 // pred_fallthru
      _
    // Predicated region
    $region10: #{actor_forward.1} parent=1 // pred_check
      _
    $region11: #{actor_forward.1} parent=1 // pred_check_branch
      %19 = sbr.rel (0) target = $region13
    $region12: #{actor_forward.1} parent=1 // pred_region
      _
    $region13: #{actor_forward.1} parent=1 // pred_fallthru
      _
    // Predicated region
    $region14: #{actor_forward.1} parent=1 // pred_check
      _
    $region15: #{actor_forward.1} parent=1 // pred_check_branch
      %21 = sbr.rel (0) target = $region17
    $region16: #{actor_forward.1} parent=1 // pred_region
      %s23 = ssub.s32 4096, 4096
      %24 = vsyncadd [#allocation3], %s23
      %s25 = sshll.u32 [#allocation2], 4
      %s26 = int_to_ptr.vmem [resolvable:$true] %s25
      %31 = dma.hbm_to_vmem [thread:$0]  %s3, 4096, %s26, [#allocation3], 128, 128, 8
    $region17: #{actor_forward.1} parent=1 // pred_fallthru
      _
    // Predicated region
    $region18: #{actor_forward.1} parent=1 // pred_check
      _
    $region19: #{actor_forward.1} parent=1 // pred_check_branch
      %33 = sbr.rel (0) target = $region21
    $region20: #{actor_forward.1} parent=1 // pred_region
      _
    $region21: #{actor_forward.1} parent=1 // pred_fallthru
      _
    // Predicated region
    $region22: #{actor_forward.1} parent=1 // pred_check
      _
    $region23: #{actor_forward.1} parent=1 // pred_check_branch
      %35 = sbr.rel (0) target = $region25
    $region24: #{actor_forward.1} parent=1 // pred_region
      %s37 = ssub.s32 2048, 2048
      %38 = vsyncadd [#allocation5], %s37
      %s39 = sshll.u32 [#allocation4], 4
      %s40 = int_to_ptr.vmem [resolvable:$true] %s39
      %45 = dma.hbm_to_vmem [thread:$0]  %s5, 2048, %s40, [#allocation5], 64, 64, 4
    $region25: #{actor_forward.1} parent=1 // pred_fallthru
      _
    // Predicated region
    $region26: #{actor_forward.1} parent=1 // pred_check
      _
    $region27: #{actor_forward.1} parent=1 // pred_check_branch
      %47 = sbr.rel (0) target = $region29
    $region28: #{actor_forward.1} parent=1 // pred_region
      _
    $region29: #{actor_forward.1} parent=1 // pred_fallthru
      _
    // Predicated region
    $region30: #{actor_forward.1} parent=1 // pred_check
      _
    $region31: #{actor_forward.1} parent=1 // pred_check_branch
      %49 = sbr.rel (0) target = $region33
    $region32: #{actor_forward.1} parent=1 // pred_region
      %50 = dma.done [#allocation3], 4096
    $region33: #{actor_forward.1} parent=1 // pred_fallthru
      _
    // Predicated region
    $region34: #{actor_forward.1} parent=1 // pred_check
      _
    $region35: #{actor_forward.1} parent=1 // pred_check_branch
      %52 = sbr.rel (0) target = $region37
    $region36: #{actor_forward.1} parent=1 // pred_region
      %53 = dma.done [#allocation5], 2048
    $region37: #{actor_forward.1} parent=1 // pred_fallthru
      _
    %v55 = vld [vmem:[%s0] sm:$0xff]
    %v56 = vpack.c.bf16 %v55, %v55
    %v57 = vld [vmem:[%s1] sm:$0xf]
    %v58 = vld [vmem:[%s2] sm:$0x3]
    %v60 = vlaneseq
    %v61 = vshrl.u32 %v60, 7
    %v62 = vsub.s32 0, %v61
    %v63 = vrot.slane %v58, %v62
    %v64 = vlaneseq
    %v65 = vshrl.u32 %v64, 7
    %v66 = vsub.s32 1, %v65
    %v67 = vrot.slane %v58, %v66
    %v72 = vunpack.c.l.s4 1983009808
    %v73 = vunpack.c.0.s8 %v72
    %v74 = vlaneseq
    %v75 = vshrl.u32 %v74, 7
    %v76 = vsub.s32 %v73, %v75
    %v77 = vrot.slane %v57, %v76
    %v78 = vcombine.high %v77, %v77
    %vm79 = vcmask 31744
    %v81 = vsel %vm79, %v56, 0
    %vm83 = vcmask 1041408
    %v85 = vsel %vm83, %v77, 0
    %v88 = vsel %vm83, %v78, 0
    %90 = vmatprep.subr.bf16.mxu0 %v88
    %91 = vmatpush1.bf16.msra.mxu0 %v85
    %92 = vmatprep.subr.bf16.mxu0 0
    %93 = vmatpush1.bf16.msra.mxu0 0
    %94 = vmatprep.subr.bf16.mxu0 0
    %95 = vmatpush1.bf16.msra.mxu0 0
    %96 = vmatprep.subr.bf16.mxu0 0
    %97 = vmatpush1.bf16.msra.mxu0 0
    %98 = vmatprep.subr.bf16.mxu0 0
    %99 = vmatpush1.bf16.msra.mxu0 0
    %100 = vmatprep.subr.bf16.mxu0 0
    %101 = vmatpush1.bf16.msra.mxu0 0
    %102 = vmatprep.subr.bf16.mxu0 0
    %103 = vmatpush1.bf16.msra.mxu0 0
    %104 = vmatprep.subr.bf16.mxu0 0
    %105 = vmatpush1.bf16.msra.mxu0 0
    %106 = vmatprep.subr.bf16.mxu0 0
    %107 = vmatpush1.bf16.msra.mxu0 0
    %108 = vmatprep.subr.bf16.mxu0 0
    %109 = vmatpush1.bf16.msra.mxu0 0
    %110 = vmatprep.subr.bf16.mxu0 0
    %111 = vmatpush1.bf16.msra.mxu0 0
    %112 = vmatprep.subr.bf16.mxu0 0
    %113 = vmatpush1.bf16.msra.mxu0 0
    %114 = vmatprep.subr.bf16.mxu0 0
    %115 = vmatpush1.bf16.msra.mxu0 0
    %116 = vmatprep.subr.bf16.mxu0 0
    %117 = vmatpush1.bf16.msra.mxu0 0
    %118 = vmatprep.subr.bf16.mxu0 0
    %119 = vmatpush1.bf16.msra.mxu0 0
    %120 = vmatprep.subr.bf16.mxu0 0
    %121 = vmatpush1.bf16.msra.mxu0 0
    %122 = vmatprep.mubr.bf16.mxu0 0
    %123 = vmatmul.mubr.bf16.gmra.mrb[0].mxu0 %v81
    %v124 = vpop.f32.mrb[0].mxu0
    %v125 = vadd.f32 %v63, %v124
    %v126 = vpop.f32.mrb[0].mxu0
    %v127 = vadd.f32 %v67, %v126
    %v128 = vpop.f32.mrb[0].mxu0
    %v129 = vpop.f32.mrb[0].mxu0
    %130 = vdwg.mxu0
    %v131 = vmax.f32 %v125, 0.0
    %v132 = vmax.f32 %v127, 0.0
    %v133 = vpack.c.bf16 %v131, %v131
    %v134 = vpack.c.bf16 %v132, %v132
    %v135 = vld [vmem:[#allocation2] sm:$0xff]
    %v136 = vld [vmem:[#allocation2 + $0x8] sm:$0xff]
    %v137 = vld [vmem:[#allocation2 + $0x10] sm:$0xff]
    %v138 = vld [vmem:[#allocation2 + $0x18] sm:$0xff]
    %v139 = vld [vmem:[#allocation2 + $0x20] sm:$0xff]
    %v140 = vld [vmem:[#allocation2 + $0x28] sm:$0xff]
    %v141 = vld [vmem:[#allocation2 + $0x30] sm:$0xff]
    %v142 = vld [vmem:[#allocation2 + $0x38] sm:$0xff]
    %v143 = vld [vmem:[#allocation2 + $0x40] sm:$0xff]
    %v144 = vld [vmem:[#allocation2 + $0x48] sm:$0xff]
    %v145 = vld [vmem:[#allocation2 + $0x50] sm:$0xff]
    %v146 = vld [vmem:[#allocation2 + $0x58] sm:$0xff]
    %v147 = vld [vmem:[#allocation2 + $0x60] sm:$0xff]
    %v148 = vld [vmem:[#allocation2 + $0x68] sm:$0xff]
    %v149 = vld [vmem:[#allocation2 + $0x70] sm:$0xff]
    %v150 = vld [vmem:[#allocation2 + $0x78] sm:$0xff]
    %v151 = vld [vmem:[#allocation2 + $0x80] sm:$0xff]
    %v152 = vld [vmem:[#allocation2 + $0x88] sm:$0xff]
    %v153 = vld [vmem:[#allocation2 + $0x90] sm:$0xff]
    %v154 = vld [vmem:[#allocation2 + $0x98] sm:$0xff]
    %v155 = vld [vmem:[#allocation2 + $0xa0] sm:$0xff]
    %v156 = vld [vmem:[#allocation2 + $0xa8] sm:$0xff]
    %v157 = vld [vmem:[#allocation2 + $0xb0] sm:$0xff]
    %v158 = vld [vmem:[#allocation2 + $0xb8] sm:$0xff]
    %v159 = vld [vmem:[#allocation2 + $0xc0] sm:$0xff]
    %v160 = vld [vmem:[#allocation2 + $0xc8] sm:$0xff]
    %v161 = vld [vmem:[#allocation2 + $0xd0] sm:$0xff]
    %v162 = vld [vmem:[#allocation2 + $0xd8] sm:$0xff]
    %v163 = vld [vmem:[#allocation2 + $0xe0] sm:$0xff]
    %v164 = vld [vmem:[#allocation2 + $0xe8] sm:$0xff]
    %v165 = vld [vmem:[#allocation2 + $0xf0] sm:$0xff]
    %v166 = vld [vmem:[#allocation2 + $0xf8] sm:$0xff]
    %v167 = vld [vmem:[%s4] sm:$0x3]
    %v169 = vlaneseq
    %v170 = vshrl.u32 %v169, 7
    %v171 = vsub.s32 0, %v170
    %v172 = vrot.slane %v167, %v171
    %v173 = vlaneseq
    %v174 = vshrl.u32 %v173, 7
    %v175 = vsub.s32 1, %v174
    %v176 = vrot.slane %v167, %v175
    %v211 = vunpack.c.l.b16 %v135
    %v212 = vunpack.c.h.b16 %v135
    %v213 = vunpack.c.l.b16 %v136
    %v214 = vunpack.c.h.b16 %v136
    %v215 = vunpack.c.l.b16 %v137
    %v216 = vunpack.c.h.b16 %v137
    %v217 = vunpack.c.l.b16 %v138
    %v218 = vunpack.c.h.b16 %v138
    %v219 = vunpack.c.l.b16 %v139
    %v220 = vunpack.c.h.b16 %v139
    %v221 = vunpack.c.l.b16 %v140
    %v222 = vunpack.c.h.b16 %v140
    %v223 = vunpack.c.l.b16 %v141
    %v224 = vunpack.c.h.b16 %v141
    %v225 = vunpack.c.l.b16 %v142
    %v226 = vunpack.c.h.b16 %v142
    %v227 = vunpack.c.l.b16 %v143
    %v228 = vunpack.c.h.b16 %v143
    %v229 = vunpack.c.l.b16 %v144
    %v230 = vunpack.c.h.b16 %v144
    %v231 = vunpack.c.l.b16 %v145
    %v232 = vunpack.c.h.b16 %v145
    %v233 = vunpack.c.l.b16 %v146
    %v234 = vunpack.c.h.b16 %v146
    %v235 = vunpack.c.l.b16 %v147
    %v236 = vunpack.c.h.b16 %v147
    %v237 = vunpack.c.l.b16 %v148
    %v238 = vunpack.c.h.b16 %v148
    %v239 = vunpack.c.l.b16 %v149
    %v240 = vunpack.c.h.b16 %v149
    %v241 = vunpack.c.l.b16 %v150
    %v242 = vunpack.c.h.b16 %v150
    %v243 = vunpack.c.l.b16 %v151
    %v244 = vunpack.c.h.b16 %v151
    %v245 = vunpack.c.l.b16 %v152
    %v246 = vunpack.c.h.b16 %v152
    %v247 = vunpack.c.l.b16 %v153
    %v248 = vunpack.c.h.b16 %v153
    %v249 = vunpack.c.l.b16 %v154
    %v250 = vunpack.c.h.b16 %v154
    %v251 = vunpack.c.l.b16 %v155
    %v252 = vunpack.c.h.b16 %v155
    %v253 = vunpack.c.l.b16 %v156
    %v254 = vunpack.c.h.b16 %v156
    %v255 = vunpack.c.l.b16 %v157
    %v256 = vunpack.c.h.b16 %v157
    %v257 = vunpack.c.l.b16 %v158
    %v258 = vunpack.c.h.b16 %v158
    %v259 = vunpack.c.l.b16 %v159
    %v260 = vunpack.c.h.b16 %v159
    %v261 = vunpack.c.l.b16 %v160
    %v262 = vunpack.c.h.b16 %v160
    %v263 = vunpack.c.l.b16 %v161
    %v264 = vunpack.c.h.b16 %v161
    %v265 = vunpack.c.l.b16 %v162
    %v266 = vunpack.c.h.b16 %v162
    %v267 = vunpack.c.l.b16 %v163
    %v268 = vunpack.c.h.b16 %v163
    %v269 = vunpack.c.l.b16 %v164
    %v270 = vunpack.c.h.b16 %v164
    %v271 = vunpack.c.l.b16 %v165
    %v272 = vunpack.c.h.b16 %v165
    %v273 = vunpack.c.l.b16 %v166
    %v274 = vunpack.c.h.b16 %v166
    %v275 = vpack.c.b16 %v213, %v211
    %v276 = vpack.c.b16 %v214, %v212
    %v277 = vpack.c.b16 %v217, %v215
    %v278 = vpack.c.b16 %v218, %v216
    %v279 = vpack.c.b16 %v221, %v219
    %v280 = vpack.c.b16 %v222, %v220
    %v281 = vpack.c.b16 %v225, %v223
    %v282 = vpack.c.b16 %v226, %v224
    %v283 = vpack.c.b16 %v229, %v227
    %v284 = vpack.c.b16 %v230, %v228
    %v285 = vpack.c.b16 %v233, %v231
    %v286 = vpack.c.b16 %v234, %v232
    %v287 = vpack.c.b16 %v237, %v235
    %v288 = vpack.c.b16 %v238, %v236
    %v289 = vpack.c.b16 %v241, %v239
    %v290 = vpack.c.b16 %v242, %v240
    %v291 = vpack.c.b16 %v245, %v243
    %v292 = vpack.c.b16 %v246, %v244
    %v293 = vpack.c.b16 %v249, %v247
    %v294 = vpack.c.b16 %v250, %v248
    %v295 = vpack.c.b16 %v253, %v251
    %v296 = vpack.c.b16 %v254, %v252
    %v297 = vpack.c.b16 %v257, %v255
    %v298 = vpack.c.b16 %v258, %v256
    %v299 = vpack.c.b16 %v261, %v259
    %v300 = vpack.c.b16 %v262, %v260
    %v301 = vpack.c.b16 %v265, %v263
    %v302 = vpack.c.b16 %v266, %v264
    %v303 = vpack.c.b16 %v269, %v267
    %v304 = vpack.c.b16 %v270, %v268
    %v305 = vpack.c.b16 %v273, %v271
    %v306 = vpack.c.b16 %v274, %v272
    %339 = vmatprep.subr.bf16.mxu0 %v276
    %340 = vmatpush1.bf16.msra.mxu0 %v275
    %341 = vmatprep.subr.bf16.mxu0 %v278
    %342 = vmatpush1.bf16.msra.mxu0 %v277
    %343 = vmatprep.subr.bf16.mxu0 %v280
    %344 = vmatpush1.bf16.msra.mxu0 %v279
    %345 = vmatprep.subr.bf16.mxu0 %v282
    %346 = vmatpush1.bf16.msra.mxu0 %v281
    %347 = vmatprep.subr.bf16.mxu0 %v284
    %348 = vmatpush1.bf16.msra.mxu0 %v283
    %349 = vmatprep.subr.bf16.mxu0 %v286
    %350 = vmatpush1.bf16.msra.mxu0 %v285
    %351 = vmatprep.subr.bf16.mxu0 %v288
    %352 = vmatpush1.bf16.msra.mxu0 %v287
    %353 = vmatprep.subr.bf16.mxu0 %v290
    %354 = vmatpush1.bf16.msra.mxu0 %v289
    %355 = vmatprep.subr.bf16.mxu0 %v292
    %356 = vmatpush1.bf16.msra.mxu0 %v291
    %357 = vmatprep.subr.bf16.mxu0 %v294
    %358 = vmatpush1.bf16.msra.mxu0 %v293
    %359 = vmatprep.subr.bf16.mxu0 %v296
    %360 = vmatpush1.bf16.msra.mxu0 %v295
    %361 = vmatprep.subr.bf16.mxu0 %v298
    %362 = vmatpush1.bf16.msra.mxu0 %v297
    %363 = vmatprep.subr.bf16.mxu0 %v300
    %364 = vmatpush1.bf16.msra.mxu0 %v299
    %365 = vmatprep.subr.bf16.mxu0 %v302
    %366 = vmatpush1.bf16.msra.mxu0 %v301
    %367 = vmatprep.subr.bf16.mxu0 %v304
    %368 = vmatpush1.bf16.msra.mxu0 %v303
    %369 = vmatprep.subr.bf16.mxu0 %v306
    %370 = vmatpush1.bf16.msra.mxu0 %v305
    %371 = vmatprep.mubr.bf16.mxu0 %v134
    %372 = vmatmul.mubr.bf16.gmra.mrb[0].mxu0 %v133
    %v373 = vpop.f32.mrb[0].mxu0
    %v374 = vadd.f32 %v172, %v373
    %v375 = vpop.f32.mrb[0].mxu0
    %v376 = vadd.f32 %v176, %v375
    %v377 = vpop.f32.mrb[0].mxu0
    %v378 = vpop.f32.mrb[0].mxu0
    %379 = vdwg.mxu0
    %v380 = vmax.f32 %v374, 0.0
    %v381 = vmax.f32 %v376, 0.0
    %v382 = vpack.c.bf16 %v380, %v380
    %v383 = vpack.c.bf16 %v381, %v381
    %v384 = vld [vmem:[#allocation4] sm:$0xf]
    %v385 = vld [vmem:[#allocation4 + $0x4] sm:$0xf]
    %v386 = vld [vmem:[#allocation4 + $0x8] sm:$0xf]
    %v387 = vld [vmem:[#allocation4 + $0xc] sm:$0xf]
    %v388 = vld [vmem:[#allocation4 + $0x10] sm:$0xf]
    %v389 = vld [vmem:[#allocation4 + $0x14] sm:$0xf]
    %v390 = vld [vmem:[#allocation4 + $0x18] sm:$0xf]
    %v391 = vld [vmem:[#allocation4 + $0x1c] sm:$0xf]
    %v392 = vld [vmem:[#allocation4 + $0x20] sm:$0xf]
    %v393 = vld [vmem:[#allocation4 + $0x24] sm:$0xf]
    %v394 = vld [vmem:[#allocation4 + $0x28] sm:$0xf]
    %v395 = vld [vmem:[#allocation4 + $0x2c] sm:$0xf]
    %v396 = vld [vmem:[#allocation4 + $0x30] sm:$0xf]
    %v397 = vld [vmem:[#allocation4 + $0x34] sm:$0xf]
    %v398 = vld [vmem:[#allocation4 + $0x38] sm:$0xf]
    %v399 = vld [vmem:[#allocation4 + $0x3c] sm:$0xf]
    %v400 = vld [vmem:[#allocation4 + $0x40] sm:$0xf]
    %v401 = vld [vmem:[#allocation4 + $0x44] sm:$0xf]
    %v402 = vld [vmem:[#allocation4 + $0x48] sm:$0xf]
    %v403 = vld [vmem:[#allocation4 + $0x4c] sm:$0xf]
    %v404 = vld [vmem:[#allocation4 + $0x50] sm:$0xf]
    %v405 = vld [vmem:[#allocation4 + $0x54] sm:$0xf]
    %v406 = vld [vmem:[#allocation4 + $0x58] sm:$0xf]
    %v407 = vld [vmem:[#allocation4 + $0x5c] sm:$0xf]
    %v408 = vld [vmem:[#allocation4 + $0x60] sm:$0xf]
    %v409 = vld [vmem:[#allocation4 + $0x64] sm:$0xf]
    %v410 = vld [vmem:[#allocation4 + $0x68] sm:$0xf]
    %v411 = vld [vmem:[#allocation4 + $0x6c] sm:$0xf]
    %v412 = vld [vmem:[#allocation4 + $0x70] sm:$0xf]
    %v413 = vld [vmem:[#allocation4 + $0x74] sm:$0xf]
    %v414 = vld [vmem:[#allocation4 + $0x78] sm:$0xf]
    %v415 = vld [vmem:[#allocation4 + $0x7c] sm:$0xf]
    %v416 = vld [vmem:[%s6] sm:$0x1]
    %v418 = vlaneseq
    %v419 = vshrl.u32 %v418, 7
    %v420 = vsub.s32 0, %v419
    %v421 = vrot.slane %v416, %v420
    %v455 = vunpack.c.l.b16 %v384
    %v456 = vunpack.c.l.b16 %v385
    %v457 = vunpack.c.l.b16 %v386
    %v458 = vunpack.c.l.b16 %v387
    %v459 = vunpack.c.l.b16 %v388
    %v460 = vunpack.c.l.b16 %v389
    %v461 = vunpack.c.l.b16 %v390
    %v462 = vunpack.c.l.b16 %v391
    %v463 = vunpack.c.l.b16 %v392
    %v464 = vunpack.c.l.b16 %v393
    %v465 = vunpack.c.l.b16 %v394
    %v466 = vunpack.c.l.b16 %v395
    %v467 = vunpack.c.l.b16 %v396
    %v468 = vunpack.c.l.b16 %v397
    %v469 = vunpack.c.l.b16 %v398
    %v470 = vunpack.c.l.b16 %v399
    %v471 = vunpack.c.l.b16 %v400
    %v472 = vunpack.c.l.b16 %v401
    %v473 = vunpack.c.l.b16 %v402
    %v474 = vunpack.c.l.b16 %v403
    %v475 = vunpack.c.l.b16 %v404
    %v476 = vunpack.c.l.b16 %v405
    %v477 = vunpack.c.l.b16 %v406
    %v478 = vunpack.c.l.b16 %v407
    %v479 = vunpack.c.l.b16 %v408
    %v480 = vunpack.c.l.b16 %v409
    %v481 = vunpack.c.l.b16 %v410
    %v482 = vunpack.c.l.b16 %v411
    %v483 = vunpack.c.l.b16 %v412
    %v484 = vunpack.c.l.b16 %v413
    %v485 = vunpack.c.l.b16 %v414
    %v486 = vunpack.c.l.b16 %v415
    %v487 = vpack.c.b16 %v456, %v455
    %v488 = vpack.c.b16 %v458, %v457
    %v489 = vpack.c.b16 %v460, %v459
    %v490 = vpack.c.b16 %v462, %v461
    %v491 = vpack.c.b16 %v464, %v463
    %v492 = vpack.c.b16 %v466, %v465
    %v493 = vpack.c.b16 %v468, %v467
    %v494 = vpack.c.b16 %v470, %v469
    %v495 = vpack.c.b16 %v472, %v471
    %v496 = vpack.c.b16 %v474, %v473
    %v497 = vpack.c.b16 %v476, %v475
    %v498 = vpack.c.b16 %v478, %v477
    %v499 = vpack.c.b16 %v480, %v479
    %v500 = vpack.c.b16 %v482, %v481
    %v501 = vpack.c.b16 %v484, %v483
    %v502 = vpack.c.b16 %v486, %v485
    %519 = vmatprep.subr.bf16.mxu0 0
    %520 = vmatpush1.bf16.msra.mxu0 %v487
    %521 = vmatprep.subr.bf16.mxu0 0
    %522 = vmatpush1.bf16.msra.mxu0 %v488
    %523 = vmatprep.subr.bf16.mxu0 0
    %524 = vmatpush1.bf16.msra.mxu0 %v489
    %525 = vmatprep.subr.bf16.mxu0 0
    %526 = vmatpush1.bf16.msra.mxu0 %v490
    %527 = vmatprep.subr.bf16.mxu0 0
    %528 = vmatpush1.bf16.msra.mxu0 %v491
    %529 = vmatprep.subr.bf16.mxu0 0
    %530 = vmatpush1.bf16.msra.mxu0 %v492
    %531 = vmatprep.subr.bf16.mxu0 0
    %532 = vmatpush1.bf16.msra.mxu0 %v493
    %533 = vmatprep.subr.bf16.mxu0 0
    %534 = vmatpush1.bf16.msra.mxu0 %v494
    %535 = vmatprep.subr.bf16.mxu0 0
    %536 = vmatpush1.bf16.msra.mxu0 %v495
    %537 = vmatprep.subr.bf16.mxu0 0
    %538 = vmatpush1.bf16.msra.mxu0 %v496
    %539 = vmatprep.subr.bf16.mxu0 0
    %540 = vmatpush1.bf16.msra.mxu0 %v497
    %541 = vmatprep.subr.bf16.mxu0 0
    %542 = vmatpush1.bf16.msra.mxu0 %v498
    %543 = vmatprep.subr.bf16.mxu0 0
    %544 = vmatpush1.bf16.msra.mxu0 %v499
    %545 = vmatprep.subr.bf16.mxu0 0
    %546 = vmatpush1.bf16.msra.mxu0 %v500
    %547 = vmatprep.subr.bf16.mxu0 0
    %548 = vmatpush1.bf16.msra.mxu0 %v501
    %549 = vmatprep.subr.bf16.mxu0 0
    %550 = vmatpush1.bf16.msra.mxu0 %v502
    %551 = vmatprep.mubr.bf16.mxu0 %v383
    %552 = vmatmul.mubr.bf16.gmra.mrb[0].mxu0 %v382
    %v553 = vpop.f32.mrb[0].mxu0
    %v554 = vadd.f32 %v421, %v553
    %v555 = vpop.f32.mrb[0].mxu0
    %v556 = vpop.f32.mrb[0].mxu0
    %v557 = vpop.f32.mrb[0].mxu0
    %558 = vdwg.mxu0
    %559 = vmax.xlane.f32.xlu0 %v554
    %v560 = vpop.xlane.xlu0 %559
    %v561 = vsub.f32 %v554, %v560
    %v562 = vmul.f32 %v561, 1.442695
    %v563 = vpow.pop %v562
    %564 = vadd.xlane.f32.xlu0 %v563
    %v565 = vpop.xlane.xlu0 %564
    %v566 = vrcp.pop %v565
    %v567 = vmul.f32 %v563, %v566
    %568 = vst [vmem:[%s7] sm:$0xff] %v567
    // Predicated region
    $region38: #{actor_forward.1} parent=1 // pred_check
      _
    $region39: #{actor_forward.1} parent=1 // pred_check_branch
      %570 = sbr.rel (0) target = $region41
    $region40: #{actor_forward.1} parent=1 // pred_region
      _
    $region41: #{actor_forward.1} parent=1 // pred_fallthru
      _
    // Predicated region
    $region42: #{actor_forward.1} parent=1 // pred_check
      _
    $region43: #{actor_forward.1} parent=1 // pred_check_branch
      %572 = sbr.rel (0) target = $region45
    $region44: #{actor_forward.1} parent=1 // pred_region
      _
    $region45: #{actor_forward.1} parent=1 // pred_fallthru
      _
    %573 = vsyncpa [#allocation3], 1
    %574 = vsyncpa [#allocation5], 1

</llo_original>
